<compile_context>
chip_gen: v5e
topology: v5e:2x2
jax: 0.10.0
libtpu: 0.0.40
codegen_flags: <defaults>
</compile_context>

<pallas_src>
import functools

import jax
import jax.numpy as jnp
from jax.experimental import pallas as pl
from jax.experimental.pallas import tpu as pltpu


TILE_B = 8192  # max batch rows (lanes) per grid step; swept default, multiple of 128.


def _round_up(n, m):
    return ((n + m - 1) // m) * m


def mlp_kernel(x_ref,            # (3, T)          input slab, batch on lanes
               w1_ref, b1_ref,   # (64, 3),  (64, 1)
               w2_ref, b2_ref,   # (128, 64), (128, 1)   (w2 possibly bf16)
               w3_ref, b3_ref,   # (64, 128), (64, 1)    (w3 possibly bf16)
               w4_ref, b4_ref,   # (64, 1),  (1, 1)
               o_ref):           # (1, T)          lane-dense output row
    x = x_ref[...]               # (3, T) float32
    w1 = w1_ref[...]             # (64, 3)

    # fc1 (in_features = 3): K=3 would pad the MXU contraction dim to 128/256, so do it
    # as three VPU broadcast-FMAs.  (64,1)*(1,T) broadcasts -> (64, T).
    h = (b1_ref[...]
         + w1[:, 0:1] * x[0:1, :]
         + w1[:, 1:2] * x[1:2, :]
         + w1[:, 2:3] * x[2:3, :])
    h = jnp.maximum(h, 0.0)                                        # (64, T) f32

    # fc2: (128, 64) @ (64, T) on the MXU (bf16 operands by default), f32 accumulation.
    h = jnp.dot(w2_ref[...], h.astype(w2_ref.dtype),
                preferred_element_type=jnp.float32) + b2_ref[...]
    h = jnp.maximum(h, 0.0)                                        # (128, T) f32

    # fc3: (64, 128) @ (128, T) on the MXU, f32 accumulation.
    h = jnp.dot(w3_ref[...], h.astype(w3_ref.dtype),
                preferred_element_type=jnp.float32) + b3_ref[...]
    h = jnp.maximum(h, 0.0)                                        # (64, T) f32

    # fc4 (out_features = 1): VPU multiply + sublane reduce (XLU); result is already the
    # lane-dense (1, T) row we want to store -> unmasked vst.
    y = jnp.sum(h * w4_ref[...], axis=0, keepdims=True) + b4_ref[...]
    o_ref[...] = y.astype(o_ref.dtype)


@functools.partial(jax.jit, static_argnames=("tile_b", "mxu_dtype"))
def dummy_mlp_forward(x, params, *, tile_b=TILE_B, mxu_dtype=jnp.bfloat16):
    """x: [B, 3] float32; params: dict of PyTorch-layout (w[out,in], b[out]) pairs.

    Returns [B, 1] float32.  mxu_dtype=jnp.float32 reproduces the fp32 reference exactly;
    the bf16 default trades ~1e-2 relative error for 2-4x faster MXU layers.
    """
    assert tile_b % 128 == 0 and tile_b >= 128, "tile_b must be a positive multiple of 128"
    B = x.shape[0]

    b_min = _round_up(B, 128)               # minimal lane-legal padded batch
    tile = min(tile_b, b_min)               # don't pad tiny batches up to tile_b
    if b_min >= 256:                        # v7x: give both TensorCores >= 1 grid step
        tile = min(tile, _round_up(pl.cdiv(b_min, 2), 128))
    n_tiles = pl.cdiv(b_min, tile)
    b_pad = n_tiles * tile

    # Batch on lanes: [3, b_pad].  allow_input_fusion below lets XLA fold this
    # transpose/pad into the pallas_call input DMA instead of a separate HBM pass.
    x_t = x.astype(jnp.float32).T                                   # (3, B)
    if b_pad != B:
        x_t = jnp.pad(x_t, ((0, 0), (0, b_pad - B)))                # (3, b_pad)

    w1, b1 = params["fc1"]          # (64, 3),   (64,)
    w2, b2 = params["fc2"]          # (128, 64), (128,)
    w3, b3 = params["fc3"]          # (64, 128), (64,)
    w4, b4 = params["fc4"]          # (1, 64),   (1,)

    b1c = b1.reshape(-1, 1)
    b2c = b2.reshape(-1, 1)
    b3c = b3.reshape(-1, 1)
    b4c = b4.reshape(1, 1)
    w4c = w4.reshape(-1, 1)         # (64, 1): per-input-feature column (VPU path, f32)
    w2m = w2.astype(mxu_dtype)      # bf16 by default (MXU-native on v5e/v6e/v7x)
    w3m = w3.astype(mxu_dtype)

    def resident(shape):
        # Full block, same block index every grid step -> stays resident in VMEM.
        return pl.BlockSpec(shape, lambda i: (0, 0))

    out = pl.pallas_call(
        mlp_kernel,
        out_shape=jax.ShapeDtypeStruct((1, b_pad), jnp.float32),
        grid=(n_tiles,),
        in_specs=[
            pl.BlockSpec((3, tile), lambda i: (0, i)),   # x slab: batch-tiled
            resident(w1.shape), resident(b1c.shape),
            resident(w2m.shape), resident(b2c.shape),
            resident(w3m.shape), resident(b3c.shape),
            resident(w4c.shape), resident(b4c.shape),
        ],
        out_specs=pl.BlockSpec((1, tile), lambda i: (0, i)),
        compiler_params=pltpu.CompilerParams(
            dimension_semantics=("parallel",),
            vmem_limit_bytes=32 * 1024 * 1024,     # headroom for TILE_B=8192 on v5e/v7x
            allow_input_fusion=[True] + [False] * 8,
        ),
    )(x_t, w1, b1c, w2m, b2c, w3m, b3c, w4c, b4c)

    # (1, b_pad) lane-dense slab -> [B, 1]; slice only when the batch was padded.
    row = out[0]
    if b_pad != B:
        row = row[:B]
    return row.reshape(B, 1)


def init_params(key):
    """Deterministic init; shapes match nn.Linear (weight [out, in], bias [out])."""
    dims = [(3, 64), (64, 128), (128, 64), (64, 1)]
    names = ["fc1", "fc2", "fc3", "fc4"]
    params = {}
    for name, (fan_in, fan_out) in zip(names, dims):
        key, kw, kb = jax.random.split(key, 3)
        bound = 1.0 / jnp.sqrt(float(fan_in))
        w = jax.random.uniform(kw, (fan_out, fan_in), jnp.float32, -bound, bound)
        b = jax.random.uniform(kb, (fan_out,), jnp.float32, -bound, bound)
        params[name] = (w, b)
    return params


def reference_forward(x, params):
    h = x
    for i, name in enumerate(["fc1", "fc2", "fc3", "fc4"]):
        w, b = params[name]
        h = h @ w.T + b
        if i < 3:
            h = jnp.maximum(h, 0.0)
    return h


if __name__ == "__main__":
    key = jax.random.PRNGKey(0)
    pkey, xkey, x2key = jax.random.split(key, 3)
    params = init_params(pkey)

    # Small demo batch; the wrapper pads to a lane-legal size internally.
    batch = 8
    x = jax.random.normal(xkey, (batch, 3), jnp.float32)
    ref = reference_forward(x, params)

    # 1) fp32 MXU path: bit-faithful to the PyTorch fp32 forward, tight tolerance.
    out_f32 = jax.block_until_ready(dummy_mlp_forward(x, params, mxu_dtype=jnp.float32))
    assert out_f32.shape == (batch, 1)
    assert jnp.allclose(out_f32, ref, atol=1e-4, rtol=1e-4), "f32 path mismatch vs reference"

    # 2) default bf16 MXU path (fast path): looser tolerance for bf16 rounding.
    out_bf16 = jax.block_until_ready(dummy_mlp_forward(x, params))
    assert out_bf16.shape == (batch, 1)
    assert jnp.allclose(out_bf16, ref, atol=3e-2, rtol=3e-2), "bf16 path mismatch vs reference"

    # 3) multi-tile + padded-batch path (exercises grid > 1 and the batch slice).
    batch2 = 300
    x2 = jax.random.normal(x2key, (batch2, 3), jnp.float32)
    ref2 = reference_forward(x2, params)
    out2 = jax.block_until_ready(dummy_mlp_forward(x2, params))
    assert out2.shape == (batch2, 1)
    assert jnp.allclose(out2, ref2, atol=3e-2, rtol=3e-2), "multi-tile path mismatch"

    print("KERNEL_OK")
</pallas_src>

<mosaic_0001>
module attributes {stable_mosaic.version = 11 : i64} {
  func.func @mlp_kernel(%arg0: i32, %arg1: memref<3x128xf32, #tpu.memory_space<vmem>>, %arg2: memref<64x3xf32, #tpu.memory_space<vmem>>, %arg3: memref<64x1xf32, #tpu.memory_space<vmem>>, %arg4: memref<128x64xf32, #tpu.memory_space<vmem>>, %arg5: memref<128x1xf32, #tpu.memory_space<vmem>>, %arg6: memref<64x128xf32, #tpu.memory_space<vmem>>, %arg7: memref<64x1xf32, #tpu.memory_space<vmem>>, %arg8: memref<64x1xf32, #tpu.memory_space<vmem>>, %arg9: memref<1x1xf32, #tpu.memory_space<vmem>>, %arg10: memref<1x128xf32, #tpu.memory_space<vmem>>) attributes {dimension_semantics = [#tpu.dimension_semantics<parallel>], iteration_bounds = array<i64: 1>, scalar_prefetch = 0 : i64, scratch_operands = 0 : i64, tpu.core_type = #tpu.core_type<tc>, window_params = [{transform_indices = @transform_0, window_bounds = array<i64: 3, 128>}, {pipeline_mode = #tpu.pipeline_mode<synchronous>, transform_indices = @transform_1, window_bounds = array<i64: 64, 3>}, {pipeline_mode = #tpu.pipeline_mode<synchronous>, transform_indices = @transform_2, window_bounds = array<i64: 64, 1>}, {pipeline_mode = #tpu.pipeline_mode<synchronous>, transform_indices = @transform_3, window_bounds = array<i64: 128, 64>}, {pipeline_mode = #tpu.pipeline_mode<synchronous>, transform_indices = @transform_4, window_bounds = array<i64: 128, 1>}, {pipeline_mode = #tpu.pipeline_mode<synchronous>, transform_indices = @transform_5, window_bounds = array<i64: 64, 128>}, {pipeline_mode = #tpu.pipeline_mode<synchronous>, transform_indices = @transform_6, window_bounds = array<i64: 64, 1>}, {pipeline_mode = #tpu.pipeline_mode<synchronous>, transform_indices = @transform_7, window_bounds = array<i64: 64, 1>}, {pipeline_mode = #tpu.pipeline_mode<synchronous>, transform_indices = @transform_8, window_bounds = array<i64: 1, 1>}, {transform_indices = @transform_9, window_bounds = array<i64: 1, 128>}]} {
    %c0 = arith.constant 0 : index
    %c0_0 = arith.constant 0 : index
    %0 = vector.load %arg1[%c0, %c0_0] : memref<3x128xf32, #tpu.memory_space<vmem>>, vector<3x128xf32>
    %c0_1 = arith.constant 0 : index
    %c0_2 = arith.constant 0 : index
    %1 = vector.load %arg2[%c0_1, %c0_2] : memref<64x3xf32, #tpu.memory_space<vmem>>, vector<64x3xf32>
    %c0_3 = arith.constant 0 : index
    %c0_4 = arith.constant 0 : index
    %2 = vector.load %arg3[%c0_3, %c0_4] : memref<64x1xf32, #tpu.memory_space<vmem>>, vector<64x1xf32>
    %3 = vector.extract_strided_slice %1 {offsets = [0, 0], sizes = [64, 1], strides = [1, 1]} : vector<64x3xf32> to vector<64x1xf32>
    %4 = vector.extract_strided_slice %0 {offsets = [0, 0], sizes = [1, 128], strides = [1, 1]} : vector<3x128xf32> to vector<1x128xf32>
    %5 = vector.broadcast %3 : vector<64x1xf32> to vector<64x128xf32>
    %6 = vector.broadcast %4 : vector<1x128xf32> to vector<64x128xf32>
    %7 = arith.mulf %5, %6 : vector<64x128xf32>
    %8 = vector.broadcast %2 : vector<64x1xf32> to vector<64x128xf32>
    %9 = arith.addf %8, %7 : vector<64x128xf32>
    %10 = vector.extract_strided_slice %1 {offsets = [0, 1], sizes = [64, 1], strides = [1, 1]} : vector<64x3xf32> to vector<64x1xf32>
    %11 = vector.extract_strided_slice %0 {offsets = [1, 0], sizes = [1, 128], strides = [1, 1]} : vector<3x128xf32> to vector<1x128xf32>
    %12 = vector.broadcast %10 : vector<64x1xf32> to vector<64x128xf32>
    %13 = vector.broadcast %11 : vector<1x128xf32> to vector<64x128xf32>
    %14 = arith.mulf %12, %13 : vector<64x128xf32>
    %15 = arith.addf %9, %14 : vector<64x128xf32>
    %16 = vector.extract_strided_slice %1 {offsets = [0, 2], sizes = [64, 1], strides = [1, 1]} : vector<64x3xf32> to vector<64x1xf32>
    %17 = vector.extract_strided_slice %0 {offsets = [2, 0], sizes = [1, 128], strides = [1, 1]} : vector<3x128xf32> to vector<1x128xf32>
    %18 = vector.broadcast %16 : vector<64x1xf32> to vector<64x128xf32>
    %19 = vector.broadcast %17 : vector<1x128xf32> to vector<64x128xf32>
    %20 = arith.mulf %18, %19 : vector<64x128xf32>
    %21 = arith.addf %15, %20 : vector<64x128xf32>
    %cst = arith.constant 0.000000e+00 : f32
    %22 = vector.broadcast %cst : f32 to vector<64x128xf32>
    %23 = arith.maximumf %21, %22 : vector<64x128xf32>
    %c0_5 = arith.constant 0 : index
    %c0_6 = arith.constant 0 : index
    %24 = vector.load %arg4[%c0_5, %c0_6] : memref<128x64xf32, #tpu.memory_space<vmem>>, vector<128x64xf32>
    %cst_7 = arith.constant dense<0.000000e+00> : vector<128x128xf32>
    %25 = tpu.matmul %24, %23, %cst_7 {dimension_numbers = #tpu.dot_dimension_numbers<[1], [0], [0], [1], [0, 0, 1, 1], [], []>} : vector<128x64xf32>, vector<64x128xf32>, vector<128x128xf32> -> vector<128x128xf32>
    %c0_8 = arith.constant 0 : index
    %c0_9 = arith.constant 0 : index
    %26 = vector.load %arg5[%c0_8, %c0_9] : memref<128x1xf32, #tpu.memory_space<vmem>>, vector<128x1xf32>
    %27 = vector.broadcast %26 : vector<128x1xf32> to vector<128x128xf32>
    %28 = arith.addf %25, %27 : vector<128x128xf32>
    %cst_10 = arith.constant 0.000000e+00 : f32
    %29 = vector.broadcast %cst_10 : f32 to vector<128x128xf32>
    %30 = arith.maximumf %28, %29 : vector<128x128xf32>
    %c0_11 = arith.constant 0 : index
    %c0_12 = arith.constant 0 : index
    %31 = vector.load %arg6[%c0_11, %c0_12] : memref<64x128xf32, #tpu.memory_space<vmem>>, vector<64x128xf32>
    %cst_13 = arith.constant dense<0.000000e+00> : vector<64x128xf32>
    %32 = tpu.matmul %31, %30, %cst_13 {dimension_numbers = #tpu.dot_dimension_numbers<[1], [0], [0], [1], [0, 0, 1, 1], [], []>} : vector<64x128xf32>, vector<128x128xf32>, vector<64x128xf32> -> vector<64x128xf32>
    %c0_14 = arith.constant 0 : index
    %c0_15 = arith.constant 0 : index
    %33 = vector.load %arg7[%c0_14, %c0_15] : memref<64x1xf32, #tpu.memory_space<vmem>>, vector<64x1xf32>
    %34 = vector.broadcast %33 : vector<64x1xf32> to vector<64x128xf32>
    %35 = arith.addf %32, %34 : vector<64x128xf32>
    %cst_16 = arith.constant 0.000000e+00 : f32
    %36 = vector.broadcast %cst_16 : f32 to vector<64x128xf32>
    %37 = arith.maximumf %35, %36 : vector<64x128xf32>
    %c0_17 = arith.constant 0 : index
    %c0_18 = arith.constant 0 : index
    %38 = vector.load %arg8[%c0_17, %c0_18] : memref<64x1xf32, #tpu.memory_space<vmem>>, vector<64x1xf32>
    %39 = vector.broadcast %38 : vector<64x1xf32> to vector<64x128xf32>
    %40 = arith.mulf %37, %39 : vector<64x128xf32>
    %cst_19 = arith.constant dense<0.000000e+00> : vector<128xf32>
    %41 = vector.multi_reduction <add>, %40, %cst_19 [0] : vector<64x128xf32> to vector<128xf32>
    %42 = vector.shape_cast %41 : vector<128xf32> to vector<1x128xf32>
    %c0_20 = arith.constant 0 : index
    %c0_21 = arith.constant 0 : index
    %43 = vector.load %arg9[%c0_20, %c0_21] : memref<1x1xf32, #tpu.memory_space<vmem>>, vector<1x1xf32>
    %44 = vector.broadcast %43 : vector<1x1xf32> to vector<1x128xf32>
    %45 = arith.addf %42, %44 : vector<1x128xf32>
    %c0_22 = arith.constant 0 : index
    %c0_23 = arith.constant 0 : index
    %46 = vector.load %arg10[%c0_22, %c0_23] : memref<1x128xf32, #tpu.memory_space<vmem>>, vector<1x128xf32>
    tpu.vector_store %arg10[%c0_22, %c0_23], %45 {strides = array<i32>} : memref<1x128xf32, #tpu.memory_space<vmem>>, vector<1x128xf32>,
    return
  }
  func.func @transform_0(%arg0: i32) -> (i32, i32) {
    %c0_i32 = arith.constant 0 : i32
    %c0_i32_0 = arith.constant 0 : i32
    return %c0_i32, %arg0 : i32, i32
  }
  func.func @transform_1(%arg0: i32) -> (i32, i32) {
    %c0_i32 = arith.constant 0 : i32
    %c0_i32_0 = arith.constant 0 : i32
    %c0_i32_1 = arith.constant 0 : i32
    return %c0_i32, %c0_i32_0 : i32, i32
  }
  func.func @transform_2(%arg0: i32) -> (i32, i32) {
    %c0_i32 = arith.constant 0 : i32
    %c0_i32_0 = arith.constant 0 : i32
    %c0_i32_1 = arith.constant 0 : i32
    return %c0_i32, %c0_i32_0 : i32, i32
  }
  func.func @transform_3(%arg0: i32) -> (i32, i32) {
    %c0_i32 = arith.constant 0 : i32
    %c0_i32_0 = arith.constant 0 : i32
    %c0_i32_1 = arith.constant 0 : i32
    return %c0_i32, %c0_i32_0 : i32, i32
  }
  func.func @transform_4(%arg0: i32) -> (i32, i32) {
    %c0_i32 = arith.constant 0 : i32
    %c0_i32_0 = arith.constant 0 : i32
    %c0_i32_1 = arith.constant 0 : i32
    return %c0_i32, %c0_i32_0 : i32, i32
  }
  func.func @transform_5(%arg0: i32) -> (i32, i32) {
    %c0_i32 = arith.constant 0 : i32
    %c0_i32_0 = arith.constant 0 : i32
    %c0_i32_1 = arith.constant 0 : i32
    return %c0_i32, %c0_i32_0 : i32, i32
  }
  func.func @transform_6(%arg0: i32) -> (i32, i32) {
    %c0_i32 = arith.constant 0 : i32
    %c0_i32_0 = arith.constant 0 : i32
    %c0_i32_1 = arith.constant 0 : i32
    return %c0_i32, %c0_i32_0 : i32, i32
  }
  func.func @transform_7(%arg0: i32) -> (i32, i32) {
    %c0_i32 = arith.constant 0 : i32
    %c0_i32_0 = arith.constant 0 : i32
    %c0_i32_1 = arith.constant 0 : i32
    return %c0_i32, %c0_i32_0 : i32, i32
  }
  func.func @transform_8(%arg0: i32) -> (i32, i32) {
    %c0_i32 = arith.constant 0 : i32
    %c0_i32_0 = arith.constant 0 : i32
    %c0_i32_1 = arith.constant 0 : i32
    return %c0_i32, %c0_i32_0 : i32, i32
  }
  func.func @transform_9(%arg0: i32) -> (i32, i32) {
    %c0_i32 = arith.constant 0 : i32
    %c0_i32_0 = arith.constant 0 : i32
    return %c0_i32, %arg0 : i32, i32
  }
}

</mosaic_0001>

<llo_original>
// kernel: dummy_mlp_forward.2
$region0: #{dummy_mlp_forward.2}
  #allocation0 [shape = 'u32[]', space=smem, size = 0x4, offset = 0x4, fixed_abs, tag = 'smem constant byte address 0x4 - core index']
  #allocation1 [shape = 'u32[72,128]{1,0:T(1,128)}', space=vmem, size = 0x9000, scoped, tag = 'internal scratch']
  #allocation2 [shape = 'u32[2048]{0}', space=vmem, size = 0x2000, scoped, tag = 'scoped memory for dummy_mlp_forward.2']
  #allocation3 [shape = 'u32[2048]{0}', space=vmem, size = 0x2000, scoped, tag = 'scoped memory for dummy_mlp_forward.2']
  #allocation4 [shape = 'u32[2048]{0}', space=vmem, size = 0x2000, scoped, tag = 'scoped memory for dummy_mlp_forward.2']
  #allocation5 [shape = 'u32[2048]{0}', space=vmem, size = 0x2000, scoped, tag = 'scoped memory for dummy_mlp_forward.2']
  #allocation6 [shape = 'u32[2048]{0}', space=vmem, size = 0x2000, scoped, tag = 'scoped memory for dummy_mlp_forward.2']
  #allocation7 [shape = 'f32[1,1]{1,0:T(1,128)S(1)}', space=vmem, size = 0x200, scoped, tag = 'scoped memory for dummy_mlp_forward.2']
  %s0 = inlined_call_operand.vmem [shape: f32[64,3], index: 0, kind: input, shape index: {}]
  %s1 = inlined_call_operand.vmem [shape: f32[64,1], index: 1, kind: input, shape index: {}]
  %s2 = inlined_call_operand.vmem [shape: f32[128,64], index: 2, kind: input, shape index: {}]
  %s3 = inlined_call_operand.vmem [shape: f32[128,1], index: 3, kind: input, shape index: {}]
  %s4 = inlined_call_operand.vmem [shape: f32[64,128], index: 4, kind: input, shape index: {}]
  %s5 = inlined_call_operand.vmem [shape: f32[64,1], index: 5, kind: input, shape index: {}]
  %s6 = inlined_call_operand.vmem [shape: f32[64,1], index: 6, kind: input, shape index: {}]
  %s7 = inlined_call_operand.<no memory space> [shape: f32[1,1], index: 7, kind: input, shape index: {}]
  %s8 = inlined_call_operand.vmem [shape: f32[3,8], index: 8, kind: input, shape index: {}]
  %s9 = inlined_call_operand.<no memory space> [shape: f32[], index: 9, kind: input, shape index: {}]
  %s10 = inlined_call_operand.vmem [shape: f32[1,128], index: 10, kind: output, shape index: {}]
  %s11 = sld [smem:[#allocation0]]
  $region46: #{dummy_mlp_forward.2} parent=0
    _
  %s13 = ssub.s32 1, %s11
  %s14 = scalar_select 0, %s13, %s11
  %v15 = vstv %s9
  %v16 = vstv %s7
  %17 = vst [vmem:[#allocation7] sm:$0x1] %v16
  $region1: #{dummy_mlp_forward.2} parent=0
    #allocation8 [shape = 'u8[2048]{0}', space=vmem, size = 0x800, dematerialized = true, scoped, tag = 'FusionAdapter Buffer %fusion.1 = f32[3,128]{1,0:T(4,128)} fusion(%param_8.1, %param_9), kind=kLoop, calls=%fused_computation.1.clone, metadata={op_name="jit(dummy_mlp_forward)/jit(_pad)/pad" stack_frame_id=8}']
    // Predicated region
    $region2: #{dummy_mlp_forward.2} parent=1 // pred_check
      _
    $region3: #{dummy_mlp_forward.2} parent=1 // pred_check_branch
      %19 = sbr.rel (0) target = $region5
    $region4: #{dummy_mlp_forward.2} parent=1 // pred_region
      _
    $region5: #{dummy_mlp_forward.2} parent=1 // pred_fallthru
      _
    // Predicated region
    $region6: #{dummy_mlp_forward.2} parent=1 // pred_check
      _
    $region7: #{dummy_mlp_forward.2} parent=1 // pred_check_branch
      %21 = sbr.rel (0) target = $region9
    $region8: #{dummy_mlp_forward.2} parent=1 // pred_region
      _
    $region9: #{dummy_mlp_forward.2} parent=1 // pred_fallthru
      _
    // Predicated region
    $region10: #{dummy_mlp_forward.2} parent=1 // pred_check
      _
    $region11: #{dummy_mlp_forward.2} parent=1 // pred_check_branch
      %23 = sbr.rel (0) target = $region13
    $region12: #{dummy_mlp_forward.2} parent=1 // pred_region
      _
    $region13: #{dummy_mlp_forward.2} parent=1 // pred_fallthru
      _
    // Predicated region
    $region14: #{dummy_mlp_forward.2} parent=1 // pred_check
      _
    $region15: #{dummy_mlp_forward.2} parent=1 // pred_check_branch
      %25 = sbr.rel (0) target = $region17
    $region16: #{dummy_mlp_forward.2} parent=1 // pred_region
      _
    $region17: #{dummy_mlp_forward.2} parent=1 // pred_fallthru
      _
    // Predicated region
    $region18: #{dummy_mlp_forward.2} parent=1 // pred_check
      _
    $region19: #{dummy_mlp_forward.2} parent=1 // pred_check_branch
      %27 = sbr.rel (0) target = $region21
    $region20: #{dummy_mlp_forward.2} parent=1 // pred_region
      _
    $region21: #{dummy_mlp_forward.2} parent=1 // pred_fallthru
      _
    // Predicated region
    $region22: #{dummy_mlp_forward.2} parent=1 // pred_check
      _
    $region23: #{dummy_mlp_forward.2} parent=1 // pred_check_branch
      %29 = sbr.rel (0) target = $region25
    $region24: #{dummy_mlp_forward.2} parent=1 // pred_region
      _
    $region25: #{dummy_mlp_forward.2} parent=1 // pred_fallthru
      _
    // Predicated region
    $region26: #{dummy_mlp_forward.2} parent=1 // pred_check
      _
    $region27: #{dummy_mlp_forward.2} parent=1 // pred_check_branch
      %31 = sbr.rel (0) target = $region29
    $region28: #{dummy_mlp_forward.2} parent=1 // pred_region
      _
    $region29: #{dummy_mlp_forward.2} parent=1 // pred_fallthru
      _
    // Predicated region
    $region30: #{dummy_mlp_forward.2} parent=1 // pred_check
      _
    $region31: #{dummy_mlp_forward.2} parent=1 // pred_check_branch
      %33 = sbr.rel (0) target = $region33
    $region32: #{dummy_mlp_forward.2} parent=1 // pred_region
      _
    $region33: #{dummy_mlp_forward.2} parent=1 // pred_fallthru
      _
    // Predicated region
    $region34: #{dummy_mlp_forward.2} parent=1 // pred_check
      _
    $region35: #{dummy_mlp_forward.2} parent=1 // pred_check_branch
      %35 = sbr.rel (0) target = $region37
    $region36: #{dummy_mlp_forward.2} parent=1 // pred_region
      _
    $region37: #{dummy_mlp_forward.2} parent=1 // pred_fallthru
      _
    %v36 = vld [vmem:[%s8] sm:$0x7]
    %v37 = vlaneseq
    %v38 = vshrl.u32 %v37, 7
    %vm40 = vcmp.lt.s32.totalorder %v38, 3
    %v41 = vsel %vm40, %v36, %v15
    %v42 = vlaneseq
    %v43 = vand.u32 %v42, 127
    %vm45 = vcmp.lt.s32.totalorder %v43, 8
    %v46 = vsel %vm45, %v41, %v15
    %s48 = ssub.s32 16, 1
    %49 = vst [vmem:[#allocation8] sm:%s48] %v46
    %v50 = vld [vmem:[#allocation8] sm:$0x7]
    %v51 = vld [vmem:[%s0] sm:$0xff]
    %v52 = vld [vmem:[%s0 + $0x8] sm:$0xff]
    %v53 = vld [vmem:[%s0 + $0x10] sm:$0xff]
    %v54 = vld [vmem:[%s0 + $0x18] sm:$0xff]
    %v55 = vld [vmem:[%s0 + $0x20] sm:$0xff]
    %v56 = vld [vmem:[%s0 + $0x28] sm:$0xff]
    %v57 = vld [vmem:[%s0 + $0x30] sm:$0xff]
    %v58 = vld [vmem:[%s0 + $0x38] sm:$0xff]
    %v59 = vld [vmem:[%s1] sm:$0xff]
    %v60 = vld [vmem:[%s1 + $0x8] sm:$0xff]
    %v61 = vld [vmem:[%s1 + $0x10] sm:$0xff]
    %v62 = vld [vmem:[%s1 + $0x18] sm:$0xff]
    %v63 = vld [vmem:[%s1 + $0x20] sm:$0xff]
    %v64 = vld [vmem:[%s1 + $0x28] sm:$0xff]
    %v65 = vld [vmem:[%s1 + $0x30] sm:$0xff]
    %v66 = vld [vmem:[%s1 + $0x38] sm:$0xff]
    %68 = vset.pattern.permute.xlu0 0
    %69 = vperm.xlu0 %68, %v51
    %v70 = vpop.permute.xlu0 %69
    %73 = vset.pattern.permute.xlu0 0
    %74 = vperm.xlu0 %73, %v52
    %v75 = vpop.permute.xlu0 %74
    %78 = vset.pattern.permute.xlu0 0
    %79 = vperm.xlu0 %78, %v53
    %v80 = vpop.permute.xlu0 %79
    %83 = vset.pattern.permute.xlu0 0
    %84 = vperm.xlu0 %83, %v54
    %v85 = vpop.permute.xlu0 %84
    %88 = vset.pattern.permute.xlu0 0
    %89 = vperm.xlu0 %88, %v55
    %v90 = vpop.permute.xlu0 %89
    %93 = vset.pattern.permute.xlu0 0
    %94 = vperm.xlu0 %93, %v56
    %v95 = vpop.permute.xlu0 %94
    %98 = vset.pattern.permute.xlu0 0
    %99 = vperm.xlu0 %98, %v57
    %v100 = vpop.permute.xlu0 %99
    %103 = vset.pattern.permute.xlu0 0
    %104 = vperm.xlu0 %103, %v58
    %v105 = vpop.permute.xlu0 %104
    %v107 = vperm.slane %v50, 0
    %v108 = vmul.f32 %v70, %v107
    %v109 = vmul.f32 %v75, %v107
    %v110 = vmul.f32 %v80, %v107
    %v111 = vmul.f32 %v85, %v107
    %v112 = vmul.f32 %v90, %v107
    %v113 = vmul.f32 %v95, %v107
    %v114 = vmul.f32 %v100, %v107
    %v115 = vmul.f32 %v105, %v107
    %117 = vset.pattern.permute.xlu0 0
    %118 = vperm.xlu0 %117, %v59
    %v119 = vpop.permute.xlu0 %118
    %122 = vset.pattern.permute.xlu0 0
    %123 = vperm.xlu0 %122, %v60
    %v124 = vpop.permute.xlu0 %123
    %127 = vset.pattern.permute.xlu0 0
    %128 = vperm.xlu0 %127, %v61
    %v129 = vpop.permute.xlu0 %128
    %132 = vset.pattern.permute.xlu0 0
    %133 = vperm.xlu0 %132, %v62
    %v134 = vpop.permute.xlu0 %133
    %137 = vset.pattern.permute.xlu0 0
    %138 = vperm.xlu0 %137, %v63
    %v139 = vpop.permute.xlu0 %138
    %142 = vset.pattern.permute.xlu0 0
    %143 = vperm.xlu0 %142, %v64
    %v144 = vpop.permute.xlu0 %143
    %147 = vset.pattern.permute.xlu0 0
    %148 = vperm.xlu0 %147, %v65
    %v149 = vpop.permute.xlu0 %148
    %152 = vset.pattern.permute.xlu0 0
    %153 = vperm.xlu0 %152, %v66
    %v154 = vpop.permute.xlu0 %153
    %v156 = vadd.f32 %v119, %v108
    %v157 = vadd.f32 %v124, %v109
    %v158 = vadd.f32 %v129, %v110
    %v159 = vadd.f32 %v134, %v111
    %v160 = vadd.f32 %v139, %v112
    %v161 = vadd.f32 %v144, %v113
    %v162 = vadd.f32 %v149, %v114
    %v163 = vadd.f32 %v154, %v115
    %164 = vset.pattern.permute.xlu0 1
    %165 = vperm.xlu0 %164, %v51
    %v166 = vpop.permute.xlu0 %165
    %168 = vset.pattern.permute.xlu0 1
    %169 = vperm.xlu0 %168, %v52
    %v170 = vpop.permute.xlu0 %169
    %172 = vset.pattern.permute.xlu0 1
    %173 = vperm.xlu0 %172, %v53
    %v174 = vpop.permute.xlu0 %173
    %176 = vset.pattern.permute.xlu0 1
    %177 = vperm.xlu0 %176, %v54
    %v178 = vpop.permute.xlu0 %177
    %180 = vset.pattern.permute.xlu0 1
    %181 = vperm.xlu0 %180, %v55
    %v182 = vpop.permute.xlu0 %181
    %184 = vset.pattern.permute.xlu0 1
    %185 = vperm.xlu0 %184, %v56
    %v186 = vpop.permute.xlu0 %185
    %188 = vset.pattern.permute.xlu0 1
    %189 = vperm.xlu0 %188, %v57
    %v190 = vpop.permute.xlu0 %189
    %192 = vset.pattern.permute.xlu0 1
    %193 = vperm.xlu0 %192, %v58
    %v194 = vpop.permute.xlu0 %193
    %v196 = vperm.slane %v50, 1
    %v197 = vmul.f32 %v166, %v196
    %v198 = vmul.f32 %v170, %v196
    %v199 = vmul.f32 %v174, %v196
    %v200 = vmul.f32 %v178, %v196
    %v201 = vmul.f32 %v182, %v196
    %v202 = vmul.f32 %v186, %v196
    %v203 = vmul.f32 %v190, %v196
    %v204 = vmul.f32 %v194, %v196
    %v205 = vadd.f32 %v156, %v197
    %v206 = vadd.f32 %v157, %v198
    %v207 = vadd.f32 %v158, %v199
    %v208 = vadd.f32 %v159, %v200
    %v209 = vadd.f32 %v160, %v201
    %v210 = vadd.f32 %v161, %v202
    %v211 = vadd.f32 %v162, %v203
    %v212 = vadd.f32 %v163, %v204
    %213 = vset.pattern.permute.xlu0 2
    %214 = vperm.xlu0 %213, %v51
    %v215 = vpop.permute.xlu0 %214
    %217 = vset.pattern.permute.xlu0 2
    %218 = vperm.xlu0 %217, %v52
    %v219 = vpop.permute.xlu0 %218
    %221 = vset.pattern.permute.xlu0 2
    %222 = vperm.xlu0 %221, %v53
    %v223 = vpop.permute.xlu0 %222
    %225 = vset.pattern.permute.xlu0 2
    %226 = vperm.xlu0 %225, %v54
    %v227 = vpop.permute.xlu0 %226
    %229 = vset.pattern.permute.xlu0 2
    %230 = vperm.xlu0 %229, %v55
    %v231 = vpop.permute.xlu0 %230
    %233 = vset.pattern.permute.xlu0 2
    %234 = vperm.xlu0 %233, %v56
    %v235 = vpop.permute.xlu0 %234
    %237 = vset.pattern.permute.xlu0 2
    %238 = vperm.xlu0 %237, %v57
    %v239 = vpop.permute.xlu0 %238
    %241 = vset.pattern.permute.xlu0 2
    %242 = vperm.xlu0 %241, %v58
    %v243 = vpop.permute.xlu0 %242
    %v245 = vperm.slane %v50, 2
    %v246 = vmul.f32 %v215, %v245
    %v247 = vmul.f32 %v219, %v245
    %v248 = vmul.f32 %v223, %v245
    %v249 = vmul.f32 %v227, %v245
    %v250 = vmul.f32 %v231, %v245
    %v251 = vmul.f32 %v235, %v245
    %v252 = vmul.f32 %v239, %v245
    %v253 = vmul.f32 %v243, %v245
    %v254 = vadd.f32 %v205, %v246
    %v255 = vadd.f32 %v206, %v247
    %v256 = vadd.f32 %v207, %v248
    %v257 = vadd.f32 %v208, %v249
    %v258 = vadd.f32 %v209, %v250
    %v259 = vadd.f32 %v210, %v251
    %v260 = vadd.f32 %v211, %v252
    %v261 = vadd.f32 %v212, %v253
    %v262 = vmax.f32 %v254, 0.0
    %v263 = vmax.f32 %v255, 0.0
    %v264 = vmax.f32 %v256, 0.0
    %v265 = vmax.f32 %v257, 0.0
    %v266 = vmax.f32 %v258, 0.0
    %v267 = vmax.f32 %v259, 0.0
    %v268 = vmax.f32 %v260, 0.0
    %v269 = vmax.f32 %v261, 0.0
    %v270 = vld [vmem:[%s2] sm:$0xff]
    %v271 = vld [vmem:[%s2 + $0x8] sm:$0xff]
    %v272 = vld [vmem:[%s2 + $0x10] sm:$0xff]
    %v273 = vld [vmem:[%s2 + $0x18] sm:$0xff]
    %v274 = vld [vmem:[%s2 + $0x20] sm:$0xff]
    %v275 = vld [vmem:[%s2 + $0x28] sm:$0xff]
    %v276 = vld [vmem:[%s2 + $0x30] sm:$0xff]
    %v277 = vld [vmem:[%s2 + $0x38] sm:$0xff]
    %v278 = vld [vmem:[%s2 + $0x40] sm:$0xff]
    %v279 = vld [vmem:[%s2 + $0x48] sm:$0xff]
    %v280 = vld [vmem:[%s2 + $0x50] sm:$0xff]
    %v281 = vld [vmem:[%s2 + $0x58] sm:$0xff]
    %v282 = vld [vmem:[%s2 + $0x60] sm:$0xff]
    %v283 = vld [vmem:[%s2 + $0x68] sm:$0xff]
    %v284 = vld [vmem:[%s2 + $0x70] sm:$0xff]
    %v285 = vld [vmem:[%s2 + $0x78] sm:$0xff]
    %v286 = vld [vmem:[%s3] sm:$0xff]
    %v287 = vld [vmem:[%s3 + $0x8] sm:$0xff]
    %v288 = vld [vmem:[%s3 + $0x10] sm:$0xff]
    %v289 = vld [vmem:[%s3 + $0x18] sm:$0xff]
    %v290 = vld [vmem:[%s3 + $0x20] sm:$0xff]
    %v291 = vld [vmem:[%s3 + $0x28] sm:$0xff]
    %v292 = vld [vmem:[%s3 + $0x30] sm:$0xff]
    %v293 = vld [vmem:[%s3 + $0x38] sm:$0xff]
    %v294 = vld [vmem:[%s3 + $0x40] sm:$0xff]
    %v295 = vld [vmem:[%s3 + $0x48] sm:$0xff]
    %v296 = vld [vmem:[%s3 + $0x50] sm:$0xff]
    %v297 = vld [vmem:[%s3 + $0x58] sm:$0xff]
    %v298 = vld [vmem:[%s3 + $0x60] sm:$0xff]
    %v299 = vld [vmem:[%s3 + $0x68] sm:$0xff]
    %v300 = vld [vmem:[%s3 + $0x70] sm:$0xff]
    %v301 = vld [vmem:[%s3 + $0x78] sm:$0xff]
    %303 = vset.pattern.permute.xlu0 0
    %304 = vperm.xlu0 %303, %v286
    %v305 = vpop.permute.xlu0 %304
    %308 = vset.pattern.permute.xlu0 0
    %309 = vperm.xlu0 %308, %v287
    %v310 = vpop.permute.xlu0 %309
    %313 = vset.pattern.permute.xlu0 0
    %314 = vperm.xlu0 %313, %v288
    %v315 = vpop.permute.xlu0 %314
    %318 = vset.pattern.permute.xlu0 0
    %319 = vperm.xlu0 %318, %v289
    %v320 = vpop.permute.xlu0 %319
    %323 = vset.pattern.permute.xlu0 0
    %324 = vperm.xlu0 %323, %v290
    %v325 = vpop.permute.xlu0 %324
    %328 = vset.pattern.permute.xlu0 0
    %329 = vperm.xlu0 %328, %v291
    %v330 = vpop.permute.xlu0 %329
    %333 = vset.pattern.permute.xlu0 0
    %334 = vperm.xlu0 %333, %v292
    %v335 = vpop.permute.xlu0 %334
    %338 = vset.pattern.permute.xlu0 0
    %339 = vperm.xlu0 %338, %v293
    %v340 = vpop.permute.xlu0 %339
    %343 = vset.pattern.permute.xlu0 0
    %344 = vperm.xlu0 %343, %v294
    %v345 = vpop.permute.xlu0 %344
    %348 = vset.pattern.permute.xlu0 0
    %349 = vperm.xlu0 %348, %v295
    %v350 = vpop.permute.xlu0 %349
    %353 = vset.pattern.permute.xlu0 0
    %354 = vperm.xlu0 %353, %v296
    %v355 = vpop.permute.xlu0 %354
    %358 = vset.pattern.permute.xlu0 0
    %359 = vperm.xlu0 %358, %v297
    %v360 = vpop.permute.xlu0 %359
    %363 = vset.pattern.permute.xlu0 0
    %364 = vperm.xlu0 %363, %v298
    %v365 = vpop.permute.xlu0 %364
    %368 = vset.pattern.permute.xlu0 0
    %369 = vperm.xlu0 %368, %v299
    %v370 = vpop.permute.xlu0 %369
    %373 = vset.pattern.permute.xlu0 0
    %374 = vperm.xlu0 %373, %v300
    %v375 = vpop.permute.xlu0 %374
    %378 = vset.pattern.permute.xlu0 0
    %379 = vperm.xlu0 %378, %v301
    %v380 = vpop.permute.xlu0 %379
    %vm382 = vcmask 523264
    %v384 = vsel %vm382, %v270, 0
    %v387 = vsel %vm382, %v271, 0
    %v390 = vsel %vm382, %v272, 0
    %v393 = vsel %vm382, %v273, 0
    %v396 = vsel %vm382, %v274, 0
    %v399 = vsel %vm382, %v275, 0
    %v402 = vsel %vm382, %v276, 0
    %v405 = vsel %vm382, %v277, 0
    %v408 = vsel %vm382, %v278, 0
    %v411 = vsel %vm382, %v279, 0
    %v414 = vsel %vm382, %v280, 0
    %v417 = vsel %vm382, %v281, 0
    %v420 = vsel %vm382, %v282, 0
    %v423 = vsel %vm382, %v283, 0
    %v426 = vsel %vm382, %v284, 0
    %v429 = vsel %vm382, %v285, 0
    %431 = vmatpush.msra.mxu0 0.0
    %432 = vmatpush.msra.mxu0 0.0
    %433 = vmatpush.msra.mxu0 0.0
    %434 = vmatpush.msra.mxu0 0.0
    %435 = vmatpush.msra.mxu0 0.0
    %436 = vmatpush.msra.mxu0 0.0
    %437 = vmatpush.msra.mxu0 0.0
    %438 = vmatpush.msra.mxu0 0.0
    %439 = vmatpush.msra.mxu0 %v269
    %440 = vmatpush.msra.mxu0 %v268
    %441 = vmatpush.msra.mxu0 %v267
    %442 = vmatpush.msra.mxu0 %v266
    %443 = vmatpush.msra.mxu0 %v265
    %444 = vmatpush.msra.mxu0 %v264
    %445 = vmatpush.msra.mxu0 %v263
    %446 = vmatpush.msra.mxu0 %v262
    %447 = vmatmul.f32.gmra.mxu0 %v384
    %v448 = vpop.f32.mrf.mxu0
    %v449 = vadd.f32 %v305, %v448
    %450 = vmatmul.f32.gmra.mxu0 %v387
    %v451 = vpop.f32.mrf.mxu0
    %v452 = vadd.f32 %v310, %v451
    %453 = vmatmul.f32.gmra.mxu0 %v390
    %v454 = vpop.f32.mrf.mxu0
    %v455 = vadd.f32 %v315, %v454
    %456 = vmatmul.f32.gmra.mxu0 %v393
    %v457 = vpop.f32.mrf.mxu0
    %v458 = vadd.f32 %v320, %v457
    %459 = vmatmul.f32.gmra.mxu0 %v396
    %v460 = vpop.f32.mrf.mxu0
    %v461 = vadd.f32 %v325, %v460
    %462 = vmatmul.f32.gmra.mxu0 %v399
    %v463 = vpop.f32.mrf.mxu0
    %v464 = vadd.f32 %v330, %v463
    %465 = vmatmul.f32.gmra.mxu0 %v402
    %v466 = vpop.f32.mrf.mxu0
    %v467 = vadd.f32 %v335, %v466
    %468 = vmatmul.f32.gmra.mxu0 %v405
    %v469 = vpop.f32.mrf.mxu0
    %v470 = vadd.f32 %v340, %v469
    %471 = vmatmul.f32.gmra.mxu0 %v408
    %v472 = vpop.f32.mrf.mxu0
    %v473 = vadd.f32 %v345, %v472
    %474 = vmatmul.f32.gmra.mxu0 %v411
    %v475 = vpop.f32.mrf.mxu0
    %v476 = vadd.f32 %v350, %v475
    %477 = vmatmul.f32.gmra.mxu0 %v414
    %v478 = vpop.f32.mrf.mxu0
    %v479 = vadd.f32 %v355, %v478
    %480 = vmatmul.f32.gmra.mxu0 %v417
    %v481 = vpop.f32.mrf.mxu0
    %v482 = vadd.f32 %v360, %v481
    %483 = vmatmul.f32.gmra.mxu0 %v420
    %v484 = vpop.f32.mrf.mxu0
    %v485 = vadd.f32 %v365, %v484
    %486 = vmatmul.f32.gmra.mxu0 %v423
    %v487 = vpop.f32.mrf.mxu0
    %v488 = vadd.f32 %v370, %v487
    %489 = vmatmul.f32.gmra.mxu0 %v426
    %v490 = vpop.f32.mrf.mxu0
    %v491 = vadd.f32 %v375, %v490
    %492 = vmatmul.f32.gmra.mxu0 %v429
    %v493 = vpop.f32.mrf.mxu0
    %v494 = vadd.f32 %v380, %v493
    %495 = vdwg.mxu0
    %v496 = vmax.f32 %v449, 0.0
    %v497 = vmax.f32 %v452, 0.0
    %v498 = vmax.f32 %v455, 0.0
    %v499 = vmax.f32 %v458, 0.0
    %v500 = vmax.f32 %v461, 0.0
    %v501 = vmax.f32 %v464, 0.0
    %v502 = vmax.f32 %v467, 0.0
    %v503 = vmax.f32 %v470, 0.0
    %v504 = vmax.f32 %v473, 0.0
    %v505 = vmax.f32 %v476, 0.0
    %v506 = vmax.f32 %v479, 0.0
    %v507 = vmax.f32 %v482, 0.0
    %v508 = vmax.f32 %v485, 0.0
    %v509 = vmax.f32 %v488, 0.0
    %v510 = vmax.f32 %v491, 0.0
    %v511 = vmax.f32 %v494, 0.0
    %v512 = vld [vmem:[%s4] sm:$0xff]
    %v513 = vld [vmem:[%s4 + $0x8] sm:$0xff]
    %v514 = vld [vmem:[%s4 + $0x10] sm:$0xff]
    %v515 = vld [vmem:[%s4 + $0x18] sm:$0xff]
    %v516 = vld [vmem:[%s4 + $0x20] sm:$0xff]
    %v517 = vld [vmem:[%s4 + $0x28] sm:$0xff]
    %v518 = vld [vmem:[%s4 + $0x30] sm:$0xff]
    %v519 = vld [vmem:[%s4 + $0x38] sm:$0xff]
    %v520 = vld [vmem:[%s5] sm:$0xff]
    %v521 = vld [vmem:[%s5 + $0x8] sm:$0xff]
    %v522 = vld [vmem:[%s5 + $0x10] sm:$0xff]
    %v523 = vld [vmem:[%s5 + $0x18] sm:$0xff]
    %v524 = vld [vmem:[%s5 + $0x20] sm:$0xff]
    %v525 = vld [vmem:[%s5 + $0x28] sm:$0xff]
    %v526 = vld [vmem:[%s5 + $0x30] sm:$0xff]
    %v527 = vld [vmem:[%s5 + $0x38] sm:$0xff]
    %529 = vset.pattern.permute.xlu0 0
    %530 = vperm.xlu0 %529, %v520
    %v531 = vpop.permute.xlu0 %530
    %534 = vset.pattern.permute.xlu0 0
    %535 = vperm.xlu0 %534, %v521
    %v536 = vpop.permute.xlu0 %535
    %539 = vset.pattern.permute.xlu0 0
    %540 = vperm.xlu0 %539, %v522
    %v541 = vpop.permute.xlu0 %540
    %544 = vset.pattern.permute.xlu0 0
    %545 = vperm.xlu0 %544, %v523
    %v546 = vpop.permute.xlu0 %545
    %549 = vset.pattern.permute.xlu0 0
    %550 = vperm.xlu0 %549, %v524
    %v551 = vpop.permute.xlu0 %550
    %554 = vset.pattern.permute.xlu0 0
    %555 = vperm.xlu0 %554, %v525
    %v556 = vpop.permute.xlu0 %555
    %559 = vset.pattern.permute.xlu0 0
    %560 = vperm.xlu0 %559, %v526
    %v561 = vpop.permute.xlu0 %560
    %564 = vset.pattern.permute.xlu0 0
    %565 = vperm.xlu0 %564, %v527
    %v566 = vpop.permute.xlu0 %565
    %568 = vmatpush.msra.mxu0 %v511
    %569 = vmatpush.msra.mxu0 %v510
    %570 = vmatpush.msra.mxu0 %v509
    %571 = vmatpush.msra.mxu0 %v508
    %572 = vmatpush.msra.mxu0 %v507
    %573 = vmatpush.msra.mxu0 %v506
    %574 = vmatpush.msra.mxu0 %v505
    %575 = vmatpush.msra.mxu0 %v504
    %576 = vmatpush.msra.mxu0 %v503
    %577 = vmatpush.msra.mxu0 %v502
    %578 = vmatpush.msra.mxu0 %v501
    %579 = vmatpush.msra.mxu0 %v500
    %580 = vmatpush.msra.mxu0 %v499
    %581 = vmatpush.msra.mxu0 %v498
    %582 = vmatpush.msra.mxu0 %v497
    %583 = vmatpush.msra.mxu0 %v496
    %584 = vmatmul.f32.gmra.mxu0 %v512
    %v585 = vpop.f32.mrf.mxu0
    %v586 = vadd.f32 %v531, %v585
    %587 = vmatmul.f32.gmra.mxu0 %v513
    %v588 = vpop.f32.mrf.mxu0
    %v589 = vadd.f32 %v536, %v588
    %590 = vmatmul.f32.gmra.mxu0 %v514
    %v591 = vpop.f32.mrf.mxu0
    %v592 = vadd.f32 %v541, %v591
    %593 = vmatmul.f32.gmra.mxu0 %v515
    %v594 = vpop.f32.mrf.mxu0
    %v595 = vadd.f32 %v546, %v594
    %596 = vmatmul.f32.gmra.mxu0 %v516
    %v597 = vpop.f32.mrf.mxu0
    %v598 = vadd.f32 %v551, %v597
    %599 = vmatmul.f32.gmra.mxu0 %v517
    %v600 = vpop.f32.mrf.mxu0
    %v601 = vadd.f32 %v556, %v600
    %602 = vmatmul.f32.gmra.mxu0 %v518
    %v603 = vpop.f32.mrf.mxu0
    %v604 = vadd.f32 %v561, %v603
    %605 = vmatmul.f32.gmra.mxu0 %v519
    %v606 = vpop.f32.mrf.mxu0
    %v607 = vadd.f32 %v566, %v606
    %608 = vdwg.mxu0
    %v609 = vmax.f32 %v586, 0.0
    %v610 = vmax.f32 %v589, 0.0
    %v611 = vmax.f32 %v592, 0.0
    %v612 = vmax.f32 %v595, 0.0
    %v613 = vmax.f32 %v598, 0.0
    %v614 = vmax.f32 %v601, 0.0
    %v615 = vmax.f32 %v604, 0.0
    %v616 = vmax.f32 %v607, 0.0
    %v617 = vld [vmem:[%s6] sm:$0xff]
    %v618 = vld [vmem:[%s6 + $0x8] sm:$0xff]
    %v619 = vld [vmem:[%s6 + $0x10] sm:$0xff]
    %v620 = vld [vmem:[%s6 + $0x18] sm:$0xff]
    %v621 = vld [vmem:[%s6 + $0x20] sm:$0xff]
    %v622 = vld [vmem:[%s6 + $0x28] sm:$0xff]
    %v623 = vld [vmem:[%s6 + $0x30] sm:$0xff]
    %v624 = vld [vmem:[%s6 + $0x38] sm:$0xff]
    %626 = vset.pattern.permute.xlu0 0
    %627 = vperm.xlu0 %626, %v617
    %v628 = vpop.permute.xlu0 %627
    %631 = vset.pattern.permute.xlu0 0
    %632 = vperm.xlu0 %631, %v618
    %v633 = vpop.permute.xlu0 %632
    %636 = vset.pattern.permute.xlu0 0
    %637 = vperm.xlu0 %636, %v619
    %v638 = vpop.permute.xlu0 %637
    %641 = vset.pattern.permute.xlu0 0
    %642 = vperm.xlu0 %641, %v620
    %v643 = vpop.permute.xlu0 %642
    %646 = vset.pattern.permute.xlu0 0
    %647 = vperm.xlu0 %646, %v621
    %v648 = vpop.permute.xlu0 %647
    %651 = vset.pattern.permute.xlu0 0
    %652 = vperm.xlu0 %651, %v622
    %v653 = vpop.permute.xlu0 %652
    %656 = vset.pattern.permute.xlu0 0
    %657 = vperm.xlu0 %656, %v623
    %v658 = vpop.permute.xlu0 %657
    %661 = vset.pattern.permute.xlu0 0
    %662 = vperm.xlu0 %661, %v624
    %v663 = vpop.permute.xlu0 %662
    %v665 = vmul.f32 %v609, %v628
    %v666 = vmul.f32 %v610, %v633
    %v667 = vmul.f32 %v611, %v638
    %v668 = vmul.f32 %v612, %v643
    %v669 = vmul.f32 %v613, %v648
    %v670 = vmul.f32 %v614, %v653
    %v671 = vmul.f32 %v615, %v658
    %v672 = vmul.f32 %v616, %v663
    %v673 = vadd.f32 %v665, %v666
    %v674 = vadd.f32 %v673, %v667
    %v675 = vadd.f32 %v674, %v668
    %v676 = vadd.f32 %v675, %v669
    %v677 = vadd.f32 %v676, %v670
    %v678 = vadd.f32 %v677, %v671
    %v679 = vadd.f32 %v678, %v672
    %v680 = vrot.slane %v679, 4
    %v681 = vadd.f32 %v679, %v680
    %v682 = vrot.slane %v681, 2
    %v683 = vadd.f32 %v681, %v682
    %v684 = vrot.slane %v683, 1
    %v685 = vadd.f32 %v683, %v684
    %v686 = vld [vmem:[#allocation7] sm:$0x1]
    %688 = vset.pattern.permute.xlu0 0
    %689 = vperm.xlu0 %688, %v686
    %v690 = vpop.permute.xlu0 %689
    %v692 = vperm.slane %v690, 0
    %v693 = vadd.f32 %v685, %v692
    %694 = vst [vmem:[%s10] sm:$0x1] %v693
    // Predicated region
    $region38: #{dummy_mlp_forward.2} parent=1 // pred_check
      _
    $region39: #{dummy_mlp_forward.2} parent=1 // pred_check_branch
      %696 = sbr.rel (0) target = $region41
    $region40: #{dummy_mlp_forward.2} parent=1 // pred_region
      _
    $region41: #{dummy_mlp_forward.2} parent=1 // pred_fallthru
      _
    // Predicated region
    $region42: #{dummy_mlp_forward.2} parent=1 // pred_check
      _
    $region43: #{dummy_mlp_forward.2} parent=1 // pred_check_branch
      %698 = sbr.rel (0) target = $region45
    $region44: #{dummy_mlp_forward.2} parent=1 // pred_region
      _
    $region45: #{dummy_mlp_forward.2} parent=1 // pred_fallthru
      _

</llo_original>
